<compile_context>
chip_gen: v7x
topology: tpu7x:2x2x1
jax: 0.10.0
libtpu: 0.0.40
codegen_flags: <defaults>
</compile_context>

<pallas_src>
import functools
import math

import jax
import jax.numpy as jnp
import numpy as np
from jax.experimental import pallas as pl
from jax.experimental.pallas import tpu as pltpu


def _intermediate_kernel(x_ref, w_ref, b_ref, o_ref):
    """One (tm, tn) output tile: o = gelu(x @ w + b).

    x_ref: [tm, H]   activation rows (native dtype -> MXU directly)
    w_ref: [H, tn]   weight tile, pre-transposed to (in, out)
    b_ref: [1, tn]   bias tile
    o_ref: [tm, tn]  output tile
    """
    acc = jnp.dot(x_ref[...], w_ref[...], preferred_element_type=jnp.float32)
    y = acc + b_ref[...].astype(jnp.float32)
    # Exact-erf GELU in f32, matching torch's gelu(x.float()).type_as(x).
    y = 0.5 * y * (1.0 + jax.lax.erf(y * jnp.float32(1.0 / math.sqrt(2.0))))
    o_ref[...] = y.astype(o_ref.dtype)


def prepare_params(weight, bias, compute_dtype=None):
    """Hoist layout transforms (and the optional bf16 cast) out of the hot path.

    weight: [I, H] (PyTorch nn.Linear (out_features, in_features)) -> [H, I]
    bias:   [I]                                                    -> [1, I]
    compute_dtype: optionally cast the weight (e.g. jnp.bfloat16) once here.
    """
    w_t = jnp.transpose(weight)
    b2 = bias.reshape(1, -1)
    if compute_dtype is not None:
        w_t = w_t.astype(compute_dtype)
    return w_t, b2


def _round_up(x, m):
    return (x + m - 1) // m * m


def _pick_tile(dim, preferred, align):
    """Largest multiple of `align` <= preferred that divides dim; else full dim."""
    if dim % align != 0:
        return dim
    t = max((min(preferred, dim) // align) * align, align)
    while dim % t != 0:
        t -= align
    return t


def _select_tiles(m8, H, I, itemsize, row_tile, col_tile, budget):
    """Pick (tm, tn, weight_resident) under a conservative double-buffered VMEM budget."""
    if I % 256 == 0:                      # v6e/v7x MXU is 2x256^2: prefer 256-aligned tn
        tn_stream = _pick_tile(I, col_tile, 256)
    else:
        tn_stream = _pick_tile(I, col_tile, 128)

    def est(tm, tn):
        # x tile + out tile + bias tile + weight tile, all counted double-buffered.
        return itemsize * 2 * (tm * H + tm * tn + tn + H * tn)

    tm = _pick_tile(m8, row_tile, 8)
    while True:
        if est(tm, I) <= budget:          # whole weight VMEM-resident
            return tm, I, True
        if est(tm, tn_stream) <= budget:  # stream weight column tiles
            return tm, tn_stream, False
        if tm <= 8:
            return tm, tn_stream, False   # smallest config; vmem_limit covers it
        tm = _pick_tile(m8, max(tm // 2, 8), 8)


@functools.partial(jax.jit,
                   static_argnames=("row_tile", "col_tile", "vmem_budget_bytes"))
def bert_intermediate(hidden_states, w_t, b2, *, row_tile=1024, col_tile=1536,
                      vmem_budget_bytes=26 * 1024 * 1024):
    """Pallas BertIntermediate forward: gelu(hidden_states @ w_t + b2).

    hidden_states: [..., H]
    w_t:           [H, I]  (pre-transposed weight from prepare_params)
    b2:            [1, I]  (reshaped bias from prepare_params)
    returns:       [..., I]
    """
    lead_shape = hidden_states.shape[:-1]
    H = hidden_states.shape[-1]
    I = w_t.shape[1]
    M = int(np.prod(lead_shape)) if lead_shape else 1

    x2 = hidden_states.reshape(M, H)
    # bf16 operand path: match activation dtype to the (possibly pre-cast) weight dtype.
    if x2.dtype != w_t.dtype:
        x2 = x2.astype(w_t.dtype)
    out_dtype = x2.dtype

    # Pad rows only to a multiple of 8, and only when needed (no full-tile pad copy).
    m8 = max(_round_up(M, 8), 8)
    if m8 != M:
        x2 = jnp.pad(x2, ((0, m8 - M), (0, 0)))

    itemsize = jnp.dtype(w_t.dtype).itemsize
    tm, tn, resident = _select_tiles(m8, H, I, itemsize, row_tile, col_tile,
                                     vmem_budget_bytes)
    # v7x megacore: keep >= 2 row blocks when possible so both TensorCores get work.
    if m8 // tm == 1 and m8 >= 16:
        tm = _pick_tile(m8, max(tm // 2, 8), 8)

    grid_m = m8 // tm
    grid_n = I // tn

    vmem_est = itemsize * 2 * (tm * H + tm * tn + tn + H * tn)
    vmem_limit = int(min(max(2 * vmem_est, 32 * 1024 * 1024), 64 * 1024 * 1024))

    # HBM traffic for the chosen tiling: x row tile resident across the inner axis,
    # weight read once when resident, else once per row block.
    w_reads = 1 if resident else grid_m
    cost = pl.CostEstimate(
        flops=2 * M * H * I,
        transcendentals=M * I,
        bytes_accessed=(m8 * H * itemsize                       # activations
                        + w_reads * H * I * itemsize            # weight
                        + I * jnp.dtype(b2.dtype).itemsize      # bias
                        + m8 * I * itemsize),                   # output writeback
    )

    if resident:
        grid = (grid_m,)
        in_specs = [
            pl.BlockSpec((tm, H), lambda i: (i, 0)),
            pl.BlockSpec((H, I), lambda i: (0, 0)),   # constant index -> DMA'd once
            pl.BlockSpec((1, I), lambda i: (0, 0)),
        ]
        out_specs = pl.BlockSpec((tm, I), lambda i: (i, 0))
        dim_sem = ("parallel",)
    else:
        # j (intermediate) inner: x row tile stays resident while weight tiles stream.
        grid = (grid_m, grid_n)
        in_specs = [
            pl.BlockSpec((tm, H), lambda i, j: (i, 0)),
            pl.BlockSpec((H, tn), lambda i, j: (0, j)),
            pl.BlockSpec((1, tn), lambda i, j: (0, j)),
        ]
        out_specs = pl.BlockSpec((tm, tn), lambda i, j: (i, j))
        dim_sem = ("parallel", "parallel")

    out = pl.pallas_call(
        _intermediate_kernel,
        out_shape=jax.ShapeDtypeStruct((m8, I), out_dtype),
        grid=grid,
        in_specs=in_specs,
        out_specs=out_specs,
        compiler_params=pltpu.CompilerParams(
            dimension_semantics=dim_sem,
            vmem_limit_bytes=vmem_limit,
        ),
        cost_estimate=cost,
    )(x2, w_t, b2)

    if m8 != M:
        out = out[:M]
    return out.reshape(lead_shape + (I,))


def _reference(hidden_states, weight, bias):
    """Pure-JAX f32 reference of the same forward (sanity check)."""
    y = jnp.einsum("...h,ih->...i", hidden_states.astype(jnp.float32),
                   weight.astype(jnp.float32)) + bias.astype(jnp.float32)
    return 0.5 * y * (1.0 + jax.lax.erf(y / jnp.float32(math.sqrt(2.0))))


if __name__ == "__main__":
    # Small shapes consistent with the module: batch=2, seq=8, hidden=32,
    # intermediate=4*hidden=128.
    B, S, H, I = 2, 8, 32, 128

    key = jax.random.PRNGKey(0)
    k_x, k_w, k_b = jax.random.split(key, 3)

    # Deterministic parameter init (nn.Linear default: U(-1/sqrt(H), 1/sqrt(H))).
    bound = 1.0 / math.sqrt(H)
    weight = jax.random.uniform(k_w, (I, H), jnp.float32, -bound, bound)
    bias = jax.random.uniform(k_b, (I,), jnp.float32, -bound, bound)
    hidden_states = jax.random.normal(k_x, (B, S, H), jnp.float32)

    ref = jax.block_until_ready(_reference(hidden_states, weight, bias))

    # f32 path (tight parity with the torch erf-GELU reference).
    w_t, b2 = prepare_params(weight, bias)
    out = jax.block_until_ready(bert_intermediate(hidden_states, w_t, b2))
    assert out.shape == (B, S, I)
    assert np.allclose(np.asarray(out), np.asarray(ref), atol=1e-5, rtol=1e-5)

    # Ragged-M path (M=5 rows): pads only to the next multiple of 8 inside the wrapper.
    hs2 = jax.random.normal(jax.random.PRNGKey(1), (1, 5, H), jnp.float32)
    out2 = jax.block_until_ready(bert_intermediate(hs2, w_t, b2))
    ref2 = jax.block_until_ready(_reference(hs2, weight, bias))
    assert np.allclose(np.asarray(out2), np.asarray(ref2), atol=1e-5, rtol=1e-5)

    # bf16 operand path (MXU-rated dtype on every generation); f32 accumulate + f32 GELU.
    w_bf, b_bf = prepare_params(weight, bias, compute_dtype=jnp.bfloat16)
    out_bf = jax.block_until_ready(
        bert_intermediate(hidden_states.astype(jnp.bfloat16), w_bf, b_bf))
    assert out_bf.dtype == jnp.bfloat16
    out_bf_f32 = np.asarray(jnp.asarray(out_bf, dtype=jnp.float32))
    assert np.allclose(out_bf_f32, np.asarray(ref), atol=5e-2, rtol=5e-2)

    # TODO(synk): other ln_after_ffn1 modes (weight standardization / LayerNorm /
    # ws_affine) and mix_act / swish activations are not exercised by the default
    # BERT config modeled here.
    print("KERNEL_OK")
</pallas_src>

<mosaic_0001>
module attributes {stable_mosaic.version = 11 : i64} {
  func.func @_intermediate_kernel(%arg0: i32, %arg1: memref<8x32xf32, #tpu.memory_space<vmem>>, %arg2: memref<32x128xf32, #tpu.memory_space<vmem>>, %arg3: memref<1x128xf32, #tpu.memory_space<vmem>>, %arg4: memref<8x128xf32, #tpu.memory_space<vmem>>) attributes {dimension_semantics = [#tpu.dimension_semantics<parallel>], iteration_bounds = array<i64: 2>, scalar_prefetch = 0 : i64, scratch_operands = 0 : i64, tpu.core_type = #tpu.core_type<tc>, window_params = [{transform_indices = @transform_0, window_bounds = array<i64: 8, 32>}, {pipeline_mode = #tpu.pipeline_mode<synchronous>, transform_indices = @transform_1, window_bounds = array<i64: 32, 128>}, {pipeline_mode = #tpu.pipeline_mode<synchronous>, transform_indices = @transform_2, window_bounds = array<i64: 1, 128>}, {transform_indices = @transform_3, window_bounds = array<i64: 8, 128>}]} {
    %c0 = arith.constant 0 : index
    %c0_0 = arith.constant 0 : index
    %0 = vector.load %arg1[%c0, %c0_0] : memref<8x32xf32, #tpu.memory_space<vmem>>, vector<8x32xf32>
    %c0_1 = arith.constant 0 : index
    %c0_2 = arith.constant 0 : index
    %1 = vector.load %arg2[%c0_1, %c0_2] : memref<32x128xf32, #tpu.memory_space<vmem>>, vector<32x128xf32>
    %cst = arith.constant dense<0.000000e+00> : vector<8x128xf32>
    %2 = tpu.matmul %0, %1, %cst {dimension_numbers = #tpu.dot_dimension_numbers<[1], [0], [0], [1], [0, 0, 1, 1], [], []>} : vector<8x32xf32>, vector<32x128xf32>, vector<8x128xf32> -> vector<8x128xf32>
    %c0_3 = arith.constant 0 : index
    %c0_4 = arith.constant 0 : index
    %3 = vector.load %arg3[%c0_3, %c0_4] : memref<1x128xf32, #tpu.memory_space<vmem>>, vector<1x128xf32>
    %4 = vector.broadcast %3 : vector<1x128xf32> to vector<8x128xf32>
    %5 = arith.addf %2, %4 : vector<8x128xf32>
    %cst_5 = arith.constant 5.000000e-01 : f32
    %6 = vector.broadcast %cst_5 : f32 to vector<8x128xf32>
    %7 = arith.mulf %6, %5 : vector<8x128xf32>
    %cst_6 = arith.constant 0.707106769 : f32
    %8 = vector.broadcast %cst_6 : f32 to vector<8x128xf32>
    %9 = arith.mulf %5, %8 : vector<8x128xf32>
    %10 = math.erf %9 : vector<8x128xf32>
    %cst_7 = arith.constant 1.000000e+00 : f32
    %11 = vector.broadcast %cst_7 : f32 to vector<8x128xf32>
    %12 = arith.addf %11, %10 : vector<8x128xf32>
    %13 = arith.mulf %7, %12 : vector<8x128xf32>
    %c0_8 = arith.constant 0 : index
    %c0_9 = arith.constant 0 : index
    %14 = vector.load %arg4[%c0_8, %c0_9] : memref<8x128xf32, #tpu.memory_space<vmem>>, vector<8x128xf32>
    tpu.vector_store %arg4[%c0_8, %c0_9], %13 {strides = array<i32>} : memref<8x128xf32, #tpu.memory_space<vmem>>, vector<8x128xf32>,
    return
  }
  func.func @transform_0(%arg0: i32) -> (i32, i32) {
    %c0_i32 = arith.constant 0 : i32
    %c0_i32_0 = arith.constant 0 : i32
    return %arg0, %c0_i32 : i32, i32
  }
  func.func @transform_1(%arg0: i32) -> (i32, i32) {
    %c0_i32 = arith.constant 0 : i32
    %c0_i32_0 = arith.constant 0 : i32
    %c0_i32_1 = arith.constant 0 : i32
    return %c0_i32, %c0_i32_0 : i32, i32
  }
  func.func @transform_2(%arg0: i32) -> (i32, i32) {
    %c0_i32 = arith.constant 0 : i32
    %c0_i32_0 = arith.constant 0 : i32
    %c0_i32_1 = arith.constant 0 : i32
    return %c0_i32, %c0_i32_0 : i32, i32
  }
  func.func @transform_3(%arg0: i32) -> (i32, i32) {
    %c0_i32 = arith.constant 0 : i32
    %c0_i32_0 = arith.constant 0 : i32
    return %arg0, %c0_i32 : i32, i32
  }
}

</mosaic_0001>

<llo_original>
// kernel: bert_intermediate.1
$region0: #{bert_intermediate.1}
  #allocation0 [shape = 'u32[]', space=smem, size = 0x4, offset = 0x4, fixed_abs, tag = 'smem constant byte address 0x4 - core index']
  #allocation1 [shape = 'u32[144,128]{1,0:T(1,128)}', space=vmem, size = 0x12000, scoped, tag = 'internal scratch']
  %s0 = inlined_call_operand.hbm [shape: f32[16,32], index: 0, kind: input, shape index: {}]
  %s1 = inlined_call_operand.hbm [shape: f32[32,128], index: 1, kind: input, shape index: {}]
  %s2 = inlined_call_operand.vmem [shape: f32[1,128], index: 2, kind: input, shape index: {}]
  %s3 = inlined_call_operand.hbm [shape: f32[16,128], index: 3, kind: output, shape index: {}]
  %s4 = sld [smem:[#allocation0]]
  $region53: #{bert_intermediate.1} parent=0
    _
  %s6 = ssub.s32 1, %s4
  %s7 = scalar_select 0, %s6, %s4
  $region1: #{bert_intermediate.1} parent=0
    #allocation2 [shape = 'u8[8192]{0}', space=vmem, size = 0x2000, scoped, tag = 'input window, operand 0']
    #allocation3 [shape = 's32[2]{0}', space=sflag, size = 0x8, scoped, tag = 'scoped memory for bert_intermediate.1']
    #allocation4 [shape = 's32[2]{0}', space=sflag, size = 0x8, scoped, tag = 'scoped memory for bert_intermediate.1']
    #allocation5 [shape = 'u8[16384]{0}', space=vmem, size = 0x4000, scoped, tag = 'input window, operand 1, single buffered']
    #allocation6 [shape = 's32[1]{0}', space=sflag, size = 0x4, scoped, tag = 'scoped memory for bert_intermediate.1']
    #allocation7 [shape = 'u8[8192]{0}', space=vmem, size = 0x2000, scoped, tag = 'output window, operand 0']
    %8 = vsyncpa [#allocation3], 0
    %s9 = scalar_lea.sflag [#allocation3], 1
    %10 = vsyncpa %s9, 0
    %11 = vsyncpa [#allocation6], 0
    %12 = vsyncpa [#allocation4], 0
    %s13 = scalar_lea.sflag [#allocation4], 1
    %14 = vsyncpa %s13, 0
    loop: start=0, step=1, limit=4
    $region2: #{bert_intermediate.1} parent=1 // loop_pre_header
      _
    $region3: #{bert_intermediate.1} parent=1 // loop_header
      %s16 = sphi 0, %s20
      %p17 = scmp.ge.s32.totalorder %s16, 4
      %s26 = sphi 0, %s28
      %s29 = sphi 0, %s26
      %s30 = sphi 0, %s29
      %s46 = sphi 0, %s30
      %s50 = sphi 0, %s50
      %s52 = sphi 0, %s50
      %s53 = sphi 0, %s52
      %s67 = sphi 0, %s53
      %s71 = sphi 0, %s71
      %s73 = sphi 0, %s71
      %s74 = sphi 0, %s73
      %s88 = sphi 0, %s74
      %s94 = sphi 0, %s96
      %s97 = sphi 0, %s94
      %s98 = sphi 0, %s97
      %s114 = sphi 0, %s98
    $region4: #{bert_intermediate.1} parent=1 // loop_header_branch
      %19 = sbr.rel (%p17) target = $region8
    $region5: #{bert_intermediate.1} parent=1 // loop_body
      %s21 = ssub.s32 %s16, 1
      %s22 = ssub.s32 %s16, 2
      %s23 = sadd.s32 %s16, 1
      %s24 = ssub.s32 %s16, %s23
      %p25 = scmp.eq.s32.totalorder %s24, 0
      %s27 = sadd.s32 %s26, 1
      %s28 = scalar_select %p25, %s26, %s27
      %p31 = pneg %p25
      %p32 = scmp.eq.s32.totalorder %s16, 1
      %p33 = por %p31, %p32
      %p34 = scmp.ne.s32.totalorder %s26, %s29
      %p35 = scmp.eq.s32.totalorder %s16, 0
      %p36 = por %p34, %p35
      %p37 = scmp.ne.s32.totalorder %s26, %s29
      %p38 = scmp.eq.s32.totalorder %s21, 1
      %p39 = por %p37, %p38
      %p40 = scmp.ne.s32.totalorder %s29, %s30
      %p41 = scmp.eq.s32.totalorder %s21, 0
      %p42 = por %p40, %p41
      %p43 = scmp.ne.s32.totalorder %s29, %s30
      %p44 = scmp.eq.s32.totalorder %s22, 1
      %p45 = por %p43, %p44
      %p47 = scmp.ne.s32.totalorder %s30, %s46
      %p48 = scmp.eq.s32.totalorder %s22, 0
      %p49 = por %p47, %p48
      %s51 = sadd.s32 %s50, 1
      %p54 = scmp.eq.s32.totalorder %s16, 1
      %p55 = scmp.ne.s32.totalorder %s50, %s52
      %p56 = scmp.eq.s32.totalorder %s16, 0
      %p57 = por %p55, %p56
      %p58 = scmp.ne.s32.totalorder %s50, %s52
      %p59 = scmp.eq.s32.totalorder %s21, 1
      %p60 = por %p58, %p59
      %p61 = scmp.ne.s32.totalorder %s52, %s53
      %p62 = scmp.eq.s32.totalorder %s21, 0
      %p63 = por %p61, %p62
      %p64 = scmp.ne.s32.totalorder %s52, %s53
      %p65 = scmp.eq.s32.totalorder %s22, 1
      %p66 = por %p64, %p65
      %p68 = scmp.ne.s32.totalorder %s53, %s67
      %p69 = scmp.eq.s32.totalorder %s22, 0
      %p70 = por %p68, %p69
      %s72 = sadd.s32 %s71, 1
      %p75 = scmp.eq.s32.totalorder %s16, 1
      %p76 = scmp.ne.s32.totalorder %s71, %s73
      %p77 = scmp.eq.s32.totalorder %s16, 0
      %p78 = por %p76, %p77
      %p79 = scmp.ne.s32.totalorder %s71, %s73
      %p80 = scmp.eq.s32.totalorder %s21, 1
      %p81 = por %p79, %p80
      %p82 = scmp.ne.s32.totalorder %s73, %s74
      %p83 = scmp.eq.s32.totalorder %s21, 0
      %p84 = por %p82, %p83
      %p85 = scmp.ne.s32.totalorder %s73, %s74
      %p86 = scmp.eq.s32.totalorder %s22, 1
      %p87 = por %p85, %p86
      %p89 = scmp.ne.s32.totalorder %s74, %s88
      %p90 = scmp.eq.s32.totalorder %s22, 0
      %p91 = por %p89, %p90
      %s92 = ssub.s32 %s16, %s23
      %p93 = scmp.eq.s32.totalorder %s92, 0
      %s95 = sadd.s32 %s94, 1
      %s96 = scalar_select %p93, %s94, %s95
      %p99 = pneg %p93
      %p100 = scmp.eq.s32.totalorder %s16, 1
      %p101 = por %p99, %p100
      %p102 = scmp.ne.s32.totalorder %s94, %s97
      %p103 = scmp.eq.s32.totalorder %s16, 0
      %p104 = por %p102, %p103
      %p105 = scmp.ne.s32.totalorder %s94, %s97
      %p106 = scmp.eq.s32.totalorder %s21, 1
      %p107 = por %p105, %p106
      %p108 = scmp.ne.s32.totalorder %s97, %s98
      %p109 = scmp.eq.s32.totalorder %s21, 0
      %p110 = por %p108, %p109
      %p111 = scmp.ne.s32.totalorder %s97, %s98
      %p112 = scmp.eq.s32.totalorder %s22, 1
      %p113 = por %p111, %p112
      %p115 = scmp.ne.s32.totalorder %s98, %s114
      %p116 = scmp.eq.s32.totalorder %s22, 0
      %p117 = por %p115, %p116
      %p118 = scmp.le.s32.totalorder 1, %s16
      %p119 = scmp.lt.s32.totalorder %s16, 3
      %p120 = pnand %p118, %p119
      %p121 = pneg %p120
      // Predicated region
      $region9: #{bert_intermediate.1} parent=5 // pred_check
        _
      $region10: #{bert_intermediate.1} parent=5 // pred_check_branch
        %123 = sbr.rel (%p120) target = $region12
      $region11: #{bert_intermediate.1} parent=5 // pred_region
        %s124 = ssub.s32 %s16, 1
        // Predicated region
        $region13: #{bert_intermediate.1} parent=11 // pred_check
          %p125 = pneg %p63
        $region14: #{bert_intermediate.1} parent=11 // pred_check_branch
          %127 = sbr.rel (%p125) target = $region16
        $region15: #{bert_intermediate.1} parent=11 // pred_region
          %s129 = ssub.s32 512, 512
          %130 = vsyncadd [#allocation6], %s129
          %s131 = sshll.u32 [#allocation5], 4
          %s132 = int_to_ptr.vmem [resolvable:$true] %s131
          %137 = dma.hbm_to_vmem [thread:$0]  %s1, 512, %s132, [#allocation6], 128, 128, 8
        $region16: #{bert_intermediate.1} parent=11 // pred_fallthru
          _
        // Predicated region
        $region17: #{bert_intermediate.1} parent=11 // pred_check
          %p138 = pneg %p84
        $region18: #{bert_intermediate.1} parent=11 // pred_check_branch
          %140 = sbr.rel (%p138) target = $region20
        $region19: #{bert_intermediate.1} parent=11 // pred_region
          _
        $region20: #{bert_intermediate.1} parent=11 // pred_fallthru
          _
      $region12: #{bert_intermediate.1} parent=5 // pred_fallthru
        _
      %p141 = scmp.lt.s32.totalorder %s16, 2
      // Predicated region
      $region21: #{bert_intermediate.1} parent=5 // pred_check
        %p142 = pneg %p141
      $region22: #{bert_intermediate.1} parent=5 // pred_check_branch
        %144 = sbr.rel (%p142) target = $region24
      $region23: #{bert_intermediate.1} parent=5 // pred_region
        // Predicated region
        $region25: #{bert_intermediate.1} parent=23 // pred_check
          %p145 = pneg %p36
        $region26: #{bert_intermediate.1} parent=23 // pred_check_branch
          %147 = sbr.rel (%p145) target = $region28
        $region27: #{bert_intermediate.1} parent=23 // pred_region
          %s148 = sand.u32 %s26, 1
          %s149 = scalar_lea.sflag [#allocation3], %s148
          %s150 = sand.u32 %s26, 1
          %s151 = smul.addr %s150, 8
          %s152 = scalar_lea.vmem [#allocation2], %s151
          %s154 = ssub.s32 128, 128
          %155 = vsyncadd %s149, %s154
          %s156 = smul.addr %s16, 128
          %s157 = scalar_lea.hbm %s0, %s156
          %s159 = sshll.u32 %s152, 4
          %s160 = int_to_ptr.vmem [resolvable:$true] %s159
          %162 = dma.hbm_to_vmem [thread:$0]  %s157, 128, %s160, %s149
        $region28: #{bert_intermediate.1} parent=23 // pred_fallthru
          _
      $region24: #{bert_intermediate.1} parent=5 // pred_fallthru
        _
      %p163 = scmp.le.s32.totalorder 1, %s16
      %p164 = scmp.lt.s32.totalorder %s16, 3
      %p165 = pnand %p163, %p164
      %p166 = pneg %p165
      // Predicated region
      $region29: #{bert_intermediate.1} parent=5 // pred_check
        _
      $region30: #{bert_intermediate.1} parent=5 // pred_check_branch
        %168 = sbr.rel (%p165) target = $region32
      $region31: #{bert_intermediate.1} parent=5 // pred_region
        %s169 = ssub.s32 %s16, 1
        %s170 = sand.u32 %s29, 1
        %s171 = scalar_lea.sflag [#allocation3], %s170
        %s172 = sand.u32 %s29, 1
        %s173 = smul.addr %s172, 8
        %s174 = scalar_lea.vmem [#allocation2], %s173
        // Predicated region
        $region33: #{bert_intermediate.1} parent=31 // pred_check
          %p175 = pneg %p42
        $region34: #{bert_intermediate.1} parent=31 // pred_check_branch
          %177 = sbr.rel (%p175) target = $region36
        $region35: #{bert_intermediate.1} parent=31 // pred_region
          %178 = dma.done %s171, 128
        $region36: #{bert_intermediate.1} parent=31 // pred_fallthru
          _
        // Predicated region
        $region37: #{bert_intermediate.1} parent=31 // pred_check
          %p179 = pneg %p63
        $region38: #{bert_intermediate.1} parent=31 // pred_check_branch
          %181 = sbr.rel (%p179) target = $region40
        $region39: #{bert_intermediate.1} parent=31 // pred_region
          %182 = dma.done [#allocation6], 512
        $region40: #{bert_intermediate.1} parent=31 // pred_fallthru
          _
        %s183 = sand.u32 %s29, 1
        %s184 = scalar_lea.sflag [#allocation3], %s183
        %s185 = sand.u32 %s29, 1
        %s186 = smul.addr %s185, 8
        %s187 = scalar_lea.vmem [#allocation2], %s186
        %p188 = pneg %p42
        %p189 = pneg %p39
        %p190 = pneg %p63
        %p191 = pneg %p60
        %p192 = pneg %p84
        %p193 = pneg %p81
        %p194 = pneg %p110
        %p195 = pneg %p107
        %s196 = sand.u32 %s97, 1
        %s197 = scalar_lea.sflag [#allocation4], %s196
        %s198 = sand.u32 %s97, 1
        %s199 = smul.addr %s198, 8
        %s200 = scalar_lea.vmem [#allocation7], %s199
        %v201 = vld [vmem:[%s174] sm:$0xff]
        %v202 = vld [vmem:[#allocation5] sm:$0xff]
        %v203 = vld [vmem:[#allocation5 + $0x8] sm:$0xff]
        %v204 = vld [vmem:[#allocation5 + $0x10] sm:$0xff]
        %v205 = vld [vmem:[#allocation5 + $0x18] sm:$0xff]
        %v206 = vld [vmem:[%s2] sm:$0x1]
        %v208 = vlaneseq
        %v209 = vshrl.u32 %v208, 7
        %v210 = vsub.s32 0, %v209
        %v211 = vrot.slane %v206, %v210
        %vm213 = vcmask 261120
        %v215 = vsel %vm213, %v201, 0
        %217 = vmatprep.subr.mxu0 0.0
        %218 = vmatpush1.msra.mxu0 %v202
        %219 = vmatprep.subr.mxu0 0.0
        %220 = vmatpush1.msra.mxu0 %v203
        %221 = vmatprep.subr.mxu0 0.0
        %222 = vmatpush1.msra.mxu0 %v204
        %223 = vmatprep.subr.mxu0 0.0
        %224 = vmatpush1.msra.mxu0 %v205
        %225 = vmatprep.subr.mxu0 0.0
        %226 = vmatpush1.msra.mxu0 0.0
        %227 = vmatprep.subr.mxu0 0.0
        %228 = vmatpush1.msra.mxu0 0.0
        %229 = vmatprep.subr.mxu0 0.0
        %230 = vmatpush1.msra.mxu0 0.0
        %231 = vmatprep.subr.mxu0 0.0
        %232 = vmatpush1.msra.mxu0 0.0
        %233 = vmatprep.subr.mxu0 0.0
        %234 = vmatpush1.msra.mxu0 0.0
        %235 = vmatprep.subr.mxu0 0.0
        %236 = vmatpush1.msra.mxu0 0.0
        %237 = vmatprep.subr.mxu0 0.0
        %238 = vmatpush1.msra.mxu0 0.0
        %239 = vmatprep.subr.mxu0 0.0
        %240 = vmatpush1.msra.mxu0 0.0
        %241 = vmatprep.subr.mxu0 0.0
        %242 = vmatpush1.msra.mxu0 0.0
        %243 = vmatprep.subr.mxu0 0.0
        %244 = vmatpush1.msra.mxu0 0.0
        %245 = vmatprep.subr.mxu0 0.0
        %246 = vmatpush1.msra.mxu0 0.0
        %247 = vmatprep.subr.mxu0 0.0
        %248 = vmatpush1.msra.mxu0 0.0
        %249 = vmatprep.subr.mxu0 0.0
        %250 = vmatpush1.msra.mxu0 0.0
        %251 = vmatprep.subr.mxu0 0.0
        %252 = vmatpush1.msra.mxu0 0.0
        %253 = vmatprep.subr.mxu0 0.0
        %254 = vmatpush1.msra.mxu0 0.0
        %255 = vmatprep.subr.mxu0 0.0
        %256 = vmatpush1.msra.mxu0 0.0
        %257 = vmatprep.subr.mxu0 0.0
        %258 = vmatpush1.msra.mxu0 0.0
        %259 = vmatprep.subr.mxu0 0.0
        %260 = vmatpush1.msra.mxu0 0.0
        %261 = vmatprep.subr.mxu0 0.0
        %262 = vmatpush1.msra.mxu0 0.0
        %263 = vmatprep.subr.mxu0 0.0
        %264 = vmatpush1.msra.mxu0 0.0
        %265 = vmatprep.subr.mxu0 0.0
        %266 = vmatpush1.msra.mxu0 0.0
        %267 = vmatprep.subr.mxu0 0.0
        %268 = vmatpush1.msra.mxu0 0.0
        %269 = vmatprep.subr.mxu0 0.0
        %270 = vmatpush1.msra.mxu0 0.0
        %271 = vmatprep.subr.mxu0 0.0
        %272 = vmatpush1.msra.mxu0 0.0
        %273 = vmatprep.subr.mxu0 0.0
        %274 = vmatpush1.msra.mxu0 0.0
        %275 = vmatprep.subr.mxu0 0.0
        %276 = vmatpush1.msra.mxu0 0.0
        %277 = vmatprep.subr.mxu0 0.0
        %278 = vmatpush1.msra.mxu0 0.0
        %279 = vmatprep.subr.mxu0 0.0
        %280 = vmatpush1.msra.mxu0 0.0
        %281 = vmatprep.mubr.f32.mxu0 0.0
        %282 = vmatmul.mubr.f32.gmra.mrb[0].mxu0 %v215
        %v283 = vpop.f32.mrb[0].mxu0
        %v284 = vadd.f32 %v211, %v283
        %v285 = vpop.f32.mrb[0].mxu0
        %286 = vdwg.mxu0
        %v287 = vmul.f32 %v284, 0.5
        %v288 = vmul.f32 %v284, 0.70710677
        %v289 = verf.f32.pop %v288
        %v290 = vadd.f32 %v289, 1.0
        %v291 = vmul.f32 %v287, %v290
        %292 = vst [vmem:[%s200] sm:$0xff] %v291
        %s293 = sand.u32 %s97, 1
        %s294 = scalar_lea.sflag [#allocation4], %s293
        %s295 = sand.u32 %s97, 1
        %s296 = smul.addr %s295, 8
        %s297 = scalar_lea.vmem [#allocation7], %s296
        // Predicated region
        $region41: #{bert_intermediate.1} parent=31 // pred_check
          %p298 = pneg %p107
        $region42: #{bert_intermediate.1} parent=31 // pred_check_branch
          %300 = sbr.rel (%p298) target = $region44
        $region43: #{bert_intermediate.1} parent=31 // pred_region
          %s302 = ssub.s32 128, 128
          %303 = vsyncadd %s294, %s302
          %s304 = smul.addr %s21, 128
          %s305 = scalar_lea.hbm %s3, %s304
          %s307 = sshll.u32 %s297, 4
          %s308 = int_to_ptr.vmem [resolvable:$true] %s307
          %310 = dma.vmem_to_hbm [thread:$0]  %s308, 128, %s305, %s294
        $region44: #{bert_intermediate.1} parent=31 // pred_fallthru
          _
      $region32: #{bert_intermediate.1} parent=5 // pred_fallthru
        _
      %p311 = scmp.le.s32.totalorder 2, %s16
      // Predicated region
      $region45: #{bert_intermediate.1} parent=5 // pred_check
        %p312 = pneg %p311
      $region46: #{bert_intermediate.1} parent=5 // pred_check_branch
        %314 = sbr.rel (%p312) target = $region48
      $region47: #{bert_intermediate.1} parent=5 // pred_region
        %s315 = ssub.s32 %s16, 2
        // Predicated region
        $region49: #{bert_intermediate.1} parent=47 // pred_check
          %p316 = pneg %p113
        $region50: #{bert_intermediate.1} parent=47 // pred_check_branch
          %318 = sbr.rel (%p316) target = $region52
        $region51: #{bert_intermediate.1} parent=47 // pred_region
          %s319 = sand.u32 %s98, 1
          %s320 = scalar_lea.sflag [#allocation4], %s319
          %s321 = sand.u32 %s98, 1
          %s322 = smul.addr %s321, 8
          %s323 = scalar_lea.vmem [#allocation7], %s322
          %324 = dma.done %s320, 128
        $region52: #{bert_intermediate.1} parent=47 // pred_fallthru
          _
      $region48: #{bert_intermediate.1} parent=5 // pred_fallthru
        _
    $region6: #{bert_intermediate.1} parent=1 // loop_footer
      %s20 = sadd.s32 1, %s16
    $region7: #{bert_intermediate.1} parent=1 // loop_footer_branch
      %15 = sbr.rel target = $region3
    $region8: #{bert_intermediate.1} parent=1 // loop_exit
      _
    %325 = vsyncpa [#allocation3], 1
    %s326 = scalar_lea.sflag [#allocation3], 1
    %327 = vsyncpa %s326, 1
    %328 = vsyncpa [#allocation6], 1
    %329 = vsyncpa [#allocation4], 1
    %s330 = scalar_lea.sflag [#allocation4], 1
    %331 = vsyncpa %s330, 1

</llo_original>
